<compile_context>
chip_gen: v7x
topology: tpu7x:2x2x1
jax: 0.10.0
libtpu: 0.0.40
codegen_flags: <defaults>
</compile_context>

<pallas_src>
import numpy as np
import jax
import jax.numpy as jnp
from jax.experimental import pallas as pl
from jax.experimental.pallas import tpu as pltpu


class Configs:
    n_j = 8          # number of tasks / decoding steps
    input_dim1 = 4   # task node feature dim
    input_dim2 = 2   # place node feature dim (place_time, process_time)
    hidden_dim = 32
    batch = 2
    M = 4


configs = Configs()


# ----------------------------------------------------------------------------
# Pallas kernel: encoder linear + fused q/k projection + masked softmax +
# greedy action selection, whole batch in a single grid step.
# ----------------------------------------------------------------------------
def build_actor_prob_fn(B, N, F, H):
    """Returns jitted callable
        (feas_flat(B*N,F), mask(B,N), Wenc(F,H), benc(1,H),
         Wqk(H,2H)  [= concat(Wq*scale, Wk)], bq(1,H) [*scale], bk(1,H))
      -> (p(B,N), action_idx(B,1) int32, selected_prob(B,1))."""

    def kernel(feas_ref, mask_ref, wenc_ref, benc_ref, wqk_ref, bq_ref, bk_ref,
               p_ref, idx_ref, sel_ref):
        # TODO(synk): Encoder1 definition is not provided; stand-in = per-node
        # Linear embedding + mean-pool graph embedding (same output shapes).
        x = feas_ref[...]                                                  # (B*N, F)
        nodes = jnp.dot(x, wenc_ref[...],
                        preferred_element_type=jnp.float32) + benc_ref[...]  # (B*N, H)

        # Fused Wq/Wk projection: one (B*N, H) @ (H, 2H) matmul.
        qk = jnp.dot(nodes, wqk_ref[...],
                     preferred_element_type=jnp.float32)                  # (B*N, 2H)
        qk = qk.reshape(B, N, 2 * H)

        # mean commutes with the linear layer:
        #   mean(nodes) @ Wq + bq == mean(nodes @ Wq) + bq
        q = jnp.mean(qk[:, :, :H], axis=1, keepdims=True) + bq_ref[...]   # (B, 1, H)
        k = qk[:, :, H:] + bk_ref[...]                                    # (B, N, H)

        # sum(query * key, dim=2); the 1/sqrt(hidden/M) scale is already
        # folded into the Wq half / bq on the host.
        scores = jnp.sum(q * k, axis=2)                                   # (B, N)
        scores = jnp.tanh(scores) * 10.0                                  # C = 10
        scores = jnp.where(mask_ref[...] > 0.5, -1e30, scores)

        # softmax over the node axis (lanes)
        m = jnp.max(scores, axis=1, keepdims=True)
        e = jnp.exp(scores - m)
        p = e / jnp.sum(e, axis=1, keepdims=True)
        p_ref[...] = p

        # greedy_select_action (train=0): argmax over nodes, first-max on ties.
        pmax = jnp.max(p, axis=1, keepdims=True)
        ids = jax.lax.broadcasted_iota(jnp.int32, (B, N), 1)
        idx_ref[...] = jnp.min(jnp.where(p >= pmax, ids, N),
                               axis=1, keepdims=True)
        sel_ref[...] = pmax                                               # p[i, argmax_i]

    pc = pl.pallas_call(
        kernel,
        out_shape=(jax.ShapeDtypeStruct((B, N), jnp.float32),
                   jax.ShapeDtypeStruct((B, 1), jnp.int32),
                   jax.ShapeDtypeStruct((B, 1), jnp.float32)),
        grid_spec=pltpu.PrefetchScalarGridSpec(
            num_scalar_prefetch=0,
            grid=(1,),                                  # single grid step, whole batch
            in_specs=[
                pl.BlockSpec((B * N, F), lambda i: (0, 0)),   # feas (flattened)
                pl.BlockSpec((B, N), lambda i: (0, 0)),       # mask
                pl.BlockSpec((F, H), lambda i: (0, 0)),       # encoder W
                pl.BlockSpec((1, H), lambda i: (0, 0)),       # encoder b
                pl.BlockSpec((H, 2 * H), lambda i: (0, 0)),   # [Wq*scale | Wk]
                pl.BlockSpec((1, H), lambda i: (0, 0)),       # bq * scale
                pl.BlockSpec((1, H), lambda i: (0, 0)),       # bk
            ],
            out_specs=[
                pl.BlockSpec((B, N), lambda i: (0, 0)),       # p
                pl.BlockSpec((B, 1), lambda i: (0, 0)),       # action index
                pl.BlockSpec((B, 1), lambda i: (0, 0)),       # selected prob
            ],
        ),
        compiler_params=pltpu.CompilerParams(dimension_semantics=("arbitrary",)),
    )
    return jax.jit(pc)


# ----------------------------------------------------------------------------
# Deterministic parameter init (torch.nn.Linear style uniform)
# ----------------------------------------------------------------------------
def _linear_init(key, fan_in, fan_out):
    kw, kb = jax.random.split(key)
    bound = 1.0 / np.sqrt(fan_in)
    w = jax.random.uniform(kw, (fan_in, fan_out), jnp.float32, -bound, bound)
    b = jax.random.uniform(kb, (1, fan_out), jnp.float32, -bound, bound)
    return w, b


# ----------------------------------------------------------------------------
# Stand-in environment (the real `satellite_edge` is not provided)
# ----------------------------------------------------------------------------
class SatelliteEdgeEnv:
    # TODO(synk): `satellite_edge` implementation not provided; deterministic
    # stand-in with the same reset/step interface and shapes.
    def __init__(self, n_j, batch):
        self.n_j = n_j
        self.batch = batch

    def reset(self, batch, data):
        datasize, T, dur_l, dur_e, dur_s, dur_se, dur_sa = [
            np.array(d, dtype=np.float32) for d in data]
        self.dur_l = dur_l
        self.task_feas = np.stack([datasize, T, dur_l, dur_e], axis=2)   # (B, n_j, 4)
        self.task_mask = np.zeros((batch, self.n_j), dtype=bool)
        self.place_time = np.ones((batch, 3), dtype=np.float32)
        return self.task_feas, self.task_mask, self.place_time

    def step(self, task_op, p_op):
        task_op = np.asarray(task_op)
        p_op = np.asarray(p_op)
        reward = np.zeros(self.batch, dtype=np.float32)
        for i in range(self.batch):
            self.task_mask[i, task_op[i]] = True
            self.place_time[i, p_op[i]] += 0.1 * self.dur_l[i, task_op[i]]
            reward[i] = -self.dur_l[i, task_op[i]]
        return self.task_feas, self.task_mask, self.place_time, reward


# ----------------------------------------------------------------------------
# Actors
# ----------------------------------------------------------------------------
class TaskActor:
    def __init__(self, batch, hidden_dim, M, key):
        self.batch, self.hidden_dim, self.M = batch, hidden_dim, M
        ks = jax.random.split(key, 3)
        self.enc_w, self.enc_b = _linear_init(ks[0], configs.input_dim1, hidden_dim)
        wq_w, wq_b = _linear_init(ks[1], hidden_dim, hidden_dim)
        wk_w, wk_b = _linear_init(ks[2], hidden_dim, hidden_dim)
        scale = 1.0 / np.sqrt(hidden_dim / M)                 # 1/sqrt(dk)
        # fold scale into Wq/bq; fuse Wq|Wk into one (H, 2H) RHS
        self.wqk_w = jnp.concatenate([wq_w * scale, wk_w], axis=1)
        self.bq = wq_b * scale
        self.bk = wk_b
        self._prob_fn = build_actor_prob_fn(batch, configs.n_j,
                                            configs.input_dim1, hidden_dim)

    def forward(self, data, index, feas, mask, action_pro, train):
        B, n_j = self.batch, configs.n_j
        feas_flat = jnp.asarray(
            np.asarray(feas, dtype=np.float32).reshape(B * n_j, configs.input_dim1))
        _, idx, sel = self._prob_fn(feas_flat,
                                    jnp.asarray(mask, jnp.float32),
                                    self.enc_w, self.enc_b,
                                    self.wqk_w, self.bq, self.bk)
        # Single device->host fetch (action index is needed for env bookkeeping).
        idx_np, sel_np = jax.device_get((idx, sel))
        action_index = idx_np.reshape(-1).astype(np.int64)    # greedy_select_action (train=0)
        for i in range(B):                                    # tag[i] = n_j * i
            action_pro[n_j * i + index] = sel_np[i, 0]        # p[i, argmax_i]
        dur_l = np.array(data[2], dtype=np.float32)
        dur_e = np.array(data[3], dtype=np.float32)
        dur_sa = np.array(data[6], dtype=np.float32)
        process_time = np.zeros((B, 3), dtype=np.float32)
        for i in range(B):
            process_time[i][0] = dur_l[i][action_index[i]]
            process_time[i][1] = dur_e[i][action_index[i]]
            process_time[i][2] = dur_sa[i][action_index[i]]
        return action_index, action_pro, process_time


class PlaceActor:
    def __init__(self, batch, hidden_dim, M, key):
        self.batch, self.hidden_dim, self.M = batch, hidden_dim, M
        ks = jax.random.split(key, 3)
        self.enc_w, self.enc_b = _linear_init(ks[0], configs.input_dim2, hidden_dim)
        wq_w, wq_b = _linear_init(ks[1], hidden_dim, hidden_dim)
        wk_w, wk_b = _linear_init(ks[2], hidden_dim, hidden_dim)
        scale = 1.0 / np.sqrt(hidden_dim / M)
        self.wqk_w = jnp.concatenate([wq_w * scale, wk_w], axis=1)
        self.bq = wq_b * scale
        self.bk = wk_b
        self._prob_fn = build_actor_prob_fn(batch, 3, configs.input_dim2, hidden_dim)
        self._zero_mask = jnp.zeros((batch, 3), jnp.float32)

    def forward(self, index, task_op, p_action_pro, place_time, process_time, train):
        B, n_j = self.batch, configs.n_j
        p_feas = np.concatenate((place_time.reshape(B, 3, 1),
                                 process_time.reshape(B, 3, 1)),
                                axis=2).astype(np.float32)
        p, idx, _ = self._prob_fn(
            jnp.asarray(p_feas.reshape(B * 3, configs.input_dim2)),
            self._zero_mask, self.enc_w, self.enc_b,
            self.wqk_w, self.bq, self.bk)
        p_np, idx_np = jax.device_get((p, idx))
        action_index = idx_np.reshape(-1).astype(np.int64)    # greedy (train=0)
        ppp = p_np.reshape(-1)
        for i in range(B):   # faithful to original: p_tag[i] = n_j*i, p_tag1[i] = 2*i
            p_action_pro[n_j * i + index] = ppp[2 * i + action_index[i]]
        return action_index, p_action_pro


# ----------------------------------------------------------------------------
# actor_critic
# ----------------------------------------------------------------------------
class ActorCritic:
    def __init__(self, batch, hidden_dim, M, key):
        self.batch = batch
        k1, k2 = jax.random.split(key)
        self.env = SatelliteEdgeEnv(configs.n_j, batch)
        self.actor1 = TaskActor(batch, hidden_dim, M, k1)
        self.actor2 = PlaceActor(batch, hidden_dim, M, k2)

    def forward(self, data, train):
        # TODO(synk): the full n_j-step decode loop could be fused into one
        # on-device kernel, but env.step (satellite_edge) is host-side glue here.
        B, n_j = self.batch, configs.n_j
        action_pro = np.zeros(B * n_j, dtype=np.float32)
        p_action_pro = np.zeros(B * n_j, dtype=np.float32)
        task_feas, task_mask, place_time = self.env.reset(B, data)
        task_seq_list, p_op_list = [], []
        rewards = np.zeros(B, dtype=np.float32)
        for i in range(n_j):
            task_op, action_pro, process_time = self.actor1.forward(
                data, i, task_feas, task_mask, action_pro, train)
            task_seq_list.append(task_op)
            p_op, p_action_pro = self.actor2.forward(
                i, task_op, p_action_pro, place_time, process_time, train)
            p_op_list.append(p_op)
            task_feas, task_mask, place_time, reward = self.env.step(task_op, p_op)
            rewards = rewards + reward
        p_action_pro = jnp.asarray(p_action_pro).reshape(B, n_j)
        task_action_pro = jnp.asarray(action_pro).reshape(B, n_j)
        task_seq = jnp.stack([jnp.asarray(t) for t in task_seq_list], axis=1)
        place_seq = jnp.stack([jnp.asarray(t) for t in p_op_list], axis=1)
        rewards = jnp.asarray(rewards, dtype=jnp.float32)
        return task_seq, place_seq, task_action_pro, p_action_pro, rewards


if __name__ == "__main__":
    key = jax.random.PRNGKey(0)
    kdata, kparams = jax.random.split(key)
    B, n_j = configs.batch, configs.n_j
    # synthetic `data` tuple: (datasize, T, dur_l, dur_e, dur_s, dur_se, dur_sa)
    ks = jax.random.split(kdata, 7)
    data = tuple(np.asarray(jax.random.uniform(ks[i], (B, n_j),
                                               minval=0.5, maxval=2.0))
                 for i in range(7))

    model = ActorCritic(batch=B, hidden_dim=configs.hidden_dim,
                        M=configs.M, key=kparams)
    task_seq, place_seq, task_action_pro, p_action_pro, rewards = model.forward(
        data, train=0)

    jax.block_until_ready((task_seq, place_seq, task_action_pro,
                           p_action_pro, rewards))
    assert task_seq.shape == (B, n_j) and place_seq.shape == (B, n_j)
    assert task_action_pro.shape == (B, n_j) and p_action_pro.shape == (B, n_j)
    print("KERNEL_OK")
</pallas_src>

<mosaic_0001>
module attributes {stable_mosaic.version = 11 : i64} {
  func.func @kernel(%arg0: i32, %arg1: memref<16x4xf32, #tpu.memory_space<vmem>>, %arg2: memref<2x8xf32, #tpu.memory_space<vmem>>, %arg3: memref<4x32xf32, #tpu.memory_space<vmem>>, %arg4: memref<1x32xf32, #tpu.memory_space<vmem>>, %arg5: memref<32x64xf32, #tpu.memory_space<vmem>>, %arg6: memref<1x32xf32, #tpu.memory_space<vmem>>, %arg7: memref<1x32xf32, #tpu.memory_space<vmem>>, %arg8: memref<2x8xf32, #tpu.memory_space<vmem>>, %arg9: memref<2x1xi32, #tpu.memory_space<vmem>>, %arg10: memref<2x1xf32, #tpu.memory_space<vmem>>) attributes {dimension_semantics = [#tpu.dimension_semantics<arbitrary>], iteration_bounds = array<i64: 1>, scalar_prefetch = 0 : i64, scratch_operands = 0 : i64, tpu.core_type = #tpu.core_type<tc>, window_params = [{pipeline_mode = #tpu.pipeline_mode<synchronous>, transform_indices = @transform_0, window_bounds = array<i64: 16, 4>}, {pipeline_mode = #tpu.pipeline_mode<synchronous>, transform_indices = @transform_1, window_bounds = array<i64: 2, 8>}, {pipeline_mode = #tpu.pipeline_mode<synchronous>, transform_indices = @transform_2, window_bounds = array<i64: 4, 32>}, {pipeline_mode = #tpu.pipeline_mode<synchronous>, transform_indices = @transform_3, window_bounds = array<i64: 1, 32>}, {pipeline_mode = #tpu.pipeline_mode<synchronous>, transform_indices = @transform_4, window_bounds = array<i64: 32, 64>}, {pipeline_mode = #tpu.pipeline_mode<synchronous>, transform_indices = @transform_5, window_bounds = array<i64: 1, 32>}, {pipeline_mode = #tpu.pipeline_mode<synchronous>, transform_indices = @transform_6, window_bounds = array<i64: 1, 32>}, {pipeline_mode = #tpu.pipeline_mode<synchronous>, transform_indices = @transform_7, window_bounds = array<i64: 2, 8>}, {pipeline_mode = #tpu.pipeline_mode<synchronous>, transform_indices = @transform_8, window_bounds = array<i64: 2, 1>}, {pipeline_mode = #tpu.pipeline_mode<synchronous>, transform_indices = @transform_9, window_bounds = array<i64: 2, 1>}]} {
    %c0 = arith.constant 0 : index
    %c0_0 = arith.constant 0 : index
    %0 = vector.load %arg1[%c0, %c0_0] : memref<16x4xf32, #tpu.memory_space<vmem>>, vector<16x4xf32>
    %c0_1 = arith.constant 0 : index
    %c0_2 = arith.constant 0 : index
    %1 = vector.load %arg3[%c0_1, %c0_2] : memref<4x32xf32, #tpu.memory_space<vmem>>, vector<4x32xf32>
    %cst = arith.constant dense<0.000000e+00> : vector<16x32xf32>
    %2 = tpu.matmul %0, %1, %cst {dimension_numbers = #tpu.dot_dimension_numbers<[1], [0], [0], [1], [0, 0, 1, 1], [], []>} : vector<16x4xf32>, vector<4x32xf32>, vector<16x32xf32> -> vector<16x32xf32>
    %c0_3 = arith.constant 0 : index
    %c0_4 = arith.constant 0 : index
    %3 = vector.load %arg4[%c0_3, %c0_4] : memref<1x32xf32, #tpu.memory_space<vmem>>, vector<1x32xf32>
    %4 = vector.broadcast %3 : vector<1x32xf32> to vector<16x32xf32>
    %5 = arith.addf %2, %4 : vector<16x32xf32>
    %c0_5 = arith.constant 0 : index
    %c0_6 = arith.constant 0 : index
    %6 = vector.load %arg5[%c0_5, %c0_6] : memref<32x64xf32, #tpu.memory_space<vmem>>, vector<32x64xf32>
    %cst_7 = arith.constant dense<0.000000e+00> : vector<16x64xf32>
    %7 = tpu.matmul %5, %6, %cst_7 {dimension_numbers = #tpu.dot_dimension_numbers<[1], [0], [0], [1], [0, 0, 1, 1], [], []>} : vector<16x32xf32>, vector<32x64xf32>, vector<16x64xf32> -> vector<16x64xf32>
    %8 = vector.shape_cast %7 : vector<16x64xf32> to vector<2x8x64xf32>
    %9 = vector.extract_strided_slice %8 {offsets = [0, 0, 0], sizes = [2, 8, 32], strides = [1, 1, 1]} : vector<2x8x64xf32> to vector<2x8x32xf32>
    %cst_8 = arith.constant dense<0.000000e+00> : vector<2x32xf32>
    %10 = vector.multi_reduction <add>, %9, %cst_8 [1] : vector<2x8x32xf32> to vector<2x32xf32>
    %11 = vector.shape_cast %10 : vector<2x32xf32> to vector<2x1x32xf32>
    %cst_9 = arith.constant 8.000000e+00 : f32
    %12 = vector.broadcast %cst_9 : f32 to vector<2x1x32xf32>
    %13 = arith.divf %11, %12 : vector<2x1x32xf32>
    %c0_10 = arith.constant 0 : index
    %c0_11 = arith.constant 0 : index
    %14 = vector.load %arg6[%c0_10, %c0_11] : memref<1x32xf32, #tpu.memory_space<vmem>>, vector<1x32xf32>
    %15 = vector.shape_cast %14 : vector<1x32xf32> to vector<1x1x32xf32>
    %16 = vector.broadcast %15 : vector<1x1x32xf32> to vector<2x1x32xf32>
    %17 = arith.addf %13, %16 : vector<2x1x32xf32>
    %18 = vector.extract_strided_slice %8 {offsets = [0, 0, 32], sizes = [2, 8, 32], strides = [1, 1, 1]} : vector<2x8x64xf32> to vector<2x8x32xf32>
    %c0_12 = arith.constant 0 : index
    %c0_13 = arith.constant 0 : index
    %19 = vector.load %arg7[%c0_12, %c0_13] : memref<1x32xf32, #tpu.memory_space<vmem>>, vector<1x32xf32>
    %20 = vector.shape_cast %19 : vector<1x32xf32> to vector<1x1x32xf32>
    %21 = vector.broadcast %20 : vector<1x1x32xf32> to vector<2x8x32xf32>
    %22 = arith.addf %18, %21 : vector<2x8x32xf32>
    %23 = vector.broadcast %17 : vector<2x1x32xf32> to vector<2x8x32xf32>
    %24 = arith.mulf %23, %22 : vector<2x8x32xf32>
    %cst_14 = arith.constant dense<0.000000e+00> : vector<2x8xf32>
    %25 = vector.multi_reduction <add>, %24, %cst_14 [2] : vector<2x8x32xf32> to vector<2x8xf32>
    %26 = math.tanh %25 : vector<2x8xf32>
    %cst_15 = arith.constant 1.000000e+01 : f32
    %27 = vector.broadcast %cst_15 : f32 to vector<2x8xf32>
    %28 = arith.mulf %26, %27 : vector<2x8xf32>
    %c0_16 = arith.constant 0 : index
    %c0_17 = arith.constant 0 : index
    %29 = vector.load %arg2[%c0_16, %c0_17] : memref<2x8xf32, #tpu.memory_space<vmem>>, vector<2x8xf32>
    %cst_18 = arith.constant 5.000000e-01 : f32
    %30 = vector.broadcast %cst_18 : f32 to vector<2x8xf32>
    %31 = arith.cmpf ogt, %29, %30 : vector<2x8xf32>
    %cst_19 = arith.constant -1.000000e+30 : f32
    %32 = vector.broadcast %cst_19 : f32 to vector<2x8xf32>
    %33 = arith.select %31, %32, %28 : vector<2x8xi1>, vector<2x8xf32>
    %cst_20 = arith.constant dense<0xFF800000> : vector<2xf32>
    %34 = vector.multi_reduction <maximumf>, %33, %cst_20 [1] : vector<2x8xf32> to vector<2xf32>
    %35 = vector.shape_cast %34 : vector<2xf32> to vector<2x1xf32>
    %36 = vector.broadcast %35 : vector<2x1xf32> to vector<2x8xf32>
    %37 = arith.subf %33, %36 : vector<2x8xf32>
    %38 = math.exp %37 : vector<2x8xf32>
    %cst_21 = arith.constant dense<0.000000e+00> : vector<2xf32>
    %39 = vector.multi_reduction <add>, %38, %cst_21 [1] : vector<2x8xf32> to vector<2xf32>
    %40 = vector.shape_cast %39 : vector<2xf32> to vector<2x1xf32>
    %41 = vector.broadcast %40 : vector<2x1xf32> to vector<2x8xf32>
    %42 = arith.divf %38, %41 : vector<2x8xf32>
    %c0_22 = arith.constant 0 : index
    %c0_23 = arith.constant 0 : index
    %43 = vector.load %arg8[%c0_22, %c0_23] : memref<2x8xf32, #tpu.memory_space<vmem>>, vector<2x8xf32>
    tpu.vector_store %arg8[%c0_22, %c0_23], %42 {strides = array<i32>} : memref<2x8xf32, #tpu.memory_space<vmem>>, vector<2x8xf32>,
    %cst_24 = arith.constant dense<0xFF800000> : vector<2xf32>
    %44 = vector.multi_reduction <maximumf>, %42, %cst_24 [1] : vector<2x8xf32> to vector<2xf32>
    %45 = vector.shape_cast %44 : vector<2xf32> to vector<2x1xf32>
    %46 = tpu.iota {dimensions = array<i32: 1>} : vector<2x8xi32>
    %47 = vector.broadcast %45 : vector<2x1xf32> to vector<2x8xf32>
    %48 = arith.cmpf oge, %42, %47 : vector<2x8xf32>
    %c8_i32 = arith.constant 8 : i32
    %49 = vector.broadcast %c8_i32 : i32 to vector<2x8xi32>
    %50 = arith.select %48, %46, %49 : vector<2x8xi1>, vector<2x8xi32>
    %cst_25 = arith.constant dense<2147483647> : vector<2xi32>
    %51 = vector.multi_reduction <minsi>, %50, %cst_25 [1] : vector<2x8xi32> to vector<2xi32>
    %52 = vector.shape_cast %51 : vector<2xi32> to vector<2x1xi32>
    %c0_26 = arith.constant 0 : index
    %c0_27 = arith.constant 0 : index
    %53 = vector.load %arg9[%c0_26, %c0_27] : memref<2x1xi32, #tpu.memory_space<vmem>>, vector<2x1xi32>
    tpu.vector_store %arg9[%c0_26, %c0_27], %52 {strides = array<i32>} : memref<2x1xi32, #tpu.memory_space<vmem>>, vector<2x1xi32>,
    %c0_28 = arith.constant 0 : index
    %c0_29 = arith.constant 0 : index
    %54 = vector.load %arg10[%c0_28, %c0_29] : memref<2x1xf32, #tpu.memory_space<vmem>>, vector<2x1xf32>
    tpu.vector_store %arg10[%c0_28, %c0_29], %45 {strides = array<i32>} : memref<2x1xf32, #tpu.memory_space<vmem>>, vector<2x1xf32>,
    return
  }
  func.func @transform_0(%arg0: i32) -> (i32, i32) {
    %c0_i32 = arith.constant 0 : i32
    %c0_i32_0 = arith.constant 0 : i32
    %c0_i32_1 = arith.constant 0 : i32
    return %c0_i32, %c0_i32_0 : i32, i32
  }
  func.func @transform_1(%arg0: i32) -> (i32, i32) {
    %c0_i32 = arith.constant 0 : i32
    %c0_i32_0 = arith.constant 0 : i32
    %c0_i32_1 = arith.constant 0 : i32
    return %c0_i32, %c0_i32_0 : i32, i32
  }
  func.func @transform_2(%arg0: i32) -> (i32, i32) {
    %c0_i32 = arith.constant 0 : i32
    %c0_i32_0 = arith.constant 0 : i32
    %c0_i32_1 = arith.constant 0 : i32
    return %c0_i32, %c0_i32_0 : i32, i32
  }
  func.func @transform_3(%arg0: i32) -> (i32, i32) {
    %c0_i32 = arith.constant 0 : i32
    %c0_i32_0 = arith.constant 0 : i32
    %c0_i32_1 = arith.constant 0 : i32
    return %c0_i32, %c0_i32_0 : i32, i32
  }
  func.func @transform_4(%arg0: i32) -> (i32, i32) {
    %c0_i32 = arith.constant 0 : i32
    %c0_i32_0 = arith.constant 0 : i32
    %c0_i32_1 = arith.constant 0 : i32
    return %c0_i32, %c0_i32_0 : i32, i32
  }
  func.func @transform_5(%arg0: i32) -> (i32, i32) {
    %c0_i32 = arith.constant 0 : i32
    %c0_i32_0 = arith.constant 0 : i32
    %c0_i32_1 = arith.constant 0 : i32
    return %c0_i32, %c0_i32_0 : i32, i32
  }
  func.func @transform_6(%arg0: i32) -> (i32, i32) {
    %c0_i32 = arith.constant 0 : i32
    %c0_i32_0 = arith.constant 0 : i32
    %c0_i32_1 = arith.constant 0 : i32
    return %c0_i32, %c0_i32_0 : i32, i32
  }
  func.func @transform_7(%arg0: i32) -> (i32, i32) {
    %c0_i32 = arith.constant 0 : i32
    %c0_i32_0 = arith.constant 0 : i32
    %c0_i32_1 = arith.constant 0 : i32
    return %c0_i32, %c0_i32_0 : i32, i32
  }
  func.func @transform_8(%arg0: i32) -> (i32, i32) {
    %c0_i32 = arith.constant 0 : i32
    %c0_i32_0 = arith.constant 0 : i32
    %c0_i32_1 = arith.constant 0 : i32
    return %c0_i32, %c0_i32_0 : i32, i32
  }
  func.func @transform_9(%arg0: i32) -> (i32, i32) {
    %c0_i32 = arith.constant 0 : i32
    %c0_i32_0 = arith.constant 0 : i32
    %c0_i32_1 = arith.constant 0 : i32
    return %c0_i32, %c0_i32_0 : i32, i32
  }
}

</mosaic_0001>

<llo_original>
// kernel: tpu_custom_call.1
$region0: #{tpu_custom_call.1}
  #allocation0 [shape = 'u32[]', space=smem, size = 0x4, offset = 0x4, fixed_abs, tag = 'smem constant byte address 0x4 - core index']
  #allocation1 [shape = 'u32[144,128]{1,0:T(1,128)}', space=vmem, size = 0x12000, scoped, tag = 'internal scratch']
  %s0 = inlined_call_operand.vmem [shape: f32[16,4], index: 0, kind: input, shape index: {}]
  %s1 = inlined_call_operand.vmem [shape: f32[2,8], index: 1, kind: input, shape index: {}]
  %s2 = inlined_call_operand.hbm [shape: f32[4,32], index: 2, kind: input, shape index: {}]
  %s3 = inlined_call_operand.vmem [shape: f32[1,32], index: 3, kind: input, shape index: {}]
  %s4 = inlined_call_operand.vmem [shape: f32[32,64], index: 4, kind: input, shape index: {}]
  %s5 = inlined_call_operand.vmem [shape: f32[1,32], index: 5, kind: input, shape index: {}]
  %s6 = inlined_call_operand.vmem [shape: f32[1,32], index: 6, kind: input, shape index: {}]
  %s7 = inlined_call_operand.hbm [shape: f32[2,8], index: 7, kind: output, shape index: {0}]
  %s8 = inlined_call_operand.vmem [shape: s32[2,1], index: 8, kind: output, shape index: {1}]
  %s9 = inlined_call_operand.vmem [shape: f32[2,1], index: 9, kind: output, shape index: {2}]
  %10 = xla_tuple %s7, %s8, %s9
  %s11 = sld [smem:[#allocation0]]
  $region58: #{tpu_custom_call.1} parent=0
    _
  %s13 = ssub.s32 1, %s11
  %s14 = scalar_select 0, %s13, %s11
  $region1: #{tpu_custom_call.1} parent=0
    #allocation2 [shape = 'u8[2048]{0}', space=vmem, size = 0x800, scoped, tag = 'input window, operand 2, single buffered']
    #allocation3 [shape = 's32[1]{0}', space=sflag, size = 0x4, scoped, tag = 'scoped memory for tpu_custom_call.1']
    #allocation4 [shape = 's32[1]{0}', space=sflag, size = 0x4, scoped, tag = 'scoped memory for tpu_custom_call.1']
    #allocation5 [shape = 'u8[1024]{0}', space=vmem, size = 0x400, scoped, tag = 'output window, operand 0, single buffered']
    %15 = vsyncpa [#allocation3], 0
    %16 = vsyncpa [#allocation4], 0
    // Predicated region
    $region2: #{tpu_custom_call.1} parent=1 // pred_check
      _
    $region3: #{tpu_custom_call.1} parent=1 // pred_check_branch
      %18 = sbr.rel (0) target = $region5
    $region4: #{tpu_custom_call.1} parent=1 // pred_region
      _
    $region5: #{tpu_custom_call.1} parent=1 // pred_fallthru
      _
    // Predicated region
    $region6: #{tpu_custom_call.1} parent=1 // pred_check
      _
    $region7: #{tpu_custom_call.1} parent=1 // pred_check_branch
      %20 = sbr.rel (0) target = $region9
    $region8: #{tpu_custom_call.1} parent=1 // pred_region
      _
    $region9: #{tpu_custom_call.1} parent=1 // pred_fallthru
      _
    // Predicated region
    $region10: #{tpu_custom_call.1} parent=1 // pred_check
      _
    $region11: #{tpu_custom_call.1} parent=1 // pred_check_branch
      %22 = sbr.rel (0) target = $region13
    $region12: #{tpu_custom_call.1} parent=1 // pred_region
      %s24 = ssub.s32 64, 64
      %25 = vsyncadd [#allocation3], %s24
      %s27 = sshll.u32 [#allocation2], 4
      %s28 = int_to_ptr.vmem [resolvable:$true] %s27
      %30 = dma.hbm_to_vmem [thread:$0]  %s2, 64, %s28, [#allocation3]
    $region13: #{tpu_custom_call.1} parent=1 // pred_fallthru
      _
    // Predicated region
    $region14: #{tpu_custom_call.1} parent=1 // pred_check
      _
    $region15: #{tpu_custom_call.1} parent=1 // pred_check_branch
      %32 = sbr.rel (0) target = $region17
    $region16: #{tpu_custom_call.1} parent=1 // pred_region
      _
    $region17: #{tpu_custom_call.1} parent=1 // pred_fallthru
      _
    // Predicated region
    $region18: #{tpu_custom_call.1} parent=1 // pred_check
      _
    $region19: #{tpu_custom_call.1} parent=1 // pred_check_branch
      %34 = sbr.rel (0) target = $region21
    $region20: #{tpu_custom_call.1} parent=1 // pred_region
      _
    $region21: #{tpu_custom_call.1} parent=1 // pred_fallthru
      _
    // Predicated region
    $region22: #{tpu_custom_call.1} parent=1 // pred_check
      _
    $region23: #{tpu_custom_call.1} parent=1 // pred_check_branch
      %36 = sbr.rel (0) target = $region25
    $region24: #{tpu_custom_call.1} parent=1 // pred_region
      _
    $region25: #{tpu_custom_call.1} parent=1 // pred_fallthru
      _
    // Predicated region
    $region26: #{tpu_custom_call.1} parent=1 // pred_check
      _
    $region27: #{tpu_custom_call.1} parent=1 // pred_check_branch
      %38 = sbr.rel (0) target = $region29
    $region28: #{tpu_custom_call.1} parent=1 // pred_region
      _
    $region29: #{tpu_custom_call.1} parent=1 // pred_fallthru
      _
    // Predicated region
    $region30: #{tpu_custom_call.1} parent=1 // pred_check
      _
    $region31: #{tpu_custom_call.1} parent=1 // pred_check_branch
      %40 = sbr.rel (0) target = $region33
    $region32: #{tpu_custom_call.1} parent=1 // pred_region
      %41 = dma.done [#allocation3], 64
    $region33: #{tpu_custom_call.1} parent=1 // pred_fallthru
      _
    %v42 = vld [vmem:[%s0] sm:$0xff]
    %v43 = vld [vmem:[%s0 + $0x8] sm:$0xff]
    %v44 = vld [vmem:[#allocation2] sm:$0xf]
    %v45 = vld [vmem:[%s3] sm:$0x1]
    %v47 = vlaneseq
    %v48 = vshrl.u32 %v47, 7
    %v49 = vsub.s32 0, %v48
    %v50 = vrot.slane %v45, %v49
    %vm52 = vcmask 31744
    %v54 = vsel %vm52, %v42, 0
    %v57 = vsel %vm52, %v43, 0
    %vm59 = vcmask 1043456
    %v61 = vsel %vm59, %v44, 0
    %63 = vmatprep.subr.mxu0 0.0
    %64 = vmatpush1.msra.mxu0 %v61
    %65 = vmatprep.subr.mxu0 0.0
    %66 = vmatpush1.msra.mxu0 0.0
    %67 = vmatprep.subr.mxu0 0.0
    %68 = vmatpush1.msra.mxu0 0.0
    %69 = vmatprep.subr.mxu0 0.0
    %70 = vmatpush1.msra.mxu0 0.0
    %71 = vmatprep.subr.mxu0 0.0
    %72 = vmatpush1.msra.mxu0 0.0
    %73 = vmatprep.subr.mxu0 0.0
    %74 = vmatpush1.msra.mxu0 0.0
    %75 = vmatprep.subr.mxu0 0.0
    %76 = vmatpush1.msra.mxu0 0.0
    %77 = vmatprep.subr.mxu0 0.0
    %78 = vmatpush1.msra.mxu0 0.0
    %79 = vmatprep.subr.mxu0 0.0
    %80 = vmatpush1.msra.mxu0 0.0
    %81 = vmatprep.subr.mxu0 0.0
    %82 = vmatpush1.msra.mxu0 0.0
    %83 = vmatprep.subr.mxu0 0.0
    %84 = vmatpush1.msra.mxu0 0.0
    %85 = vmatprep.subr.mxu0 0.0
    %86 = vmatpush1.msra.mxu0 0.0
    %87 = vmatprep.subr.mxu0 0.0
    %88 = vmatpush1.msra.mxu0 0.0
    %89 = vmatprep.subr.mxu0 0.0
    %90 = vmatpush1.msra.mxu0 0.0
    %91 = vmatprep.subr.mxu0 0.0
    %92 = vmatpush1.msra.mxu0 0.0
    %93 = vmatprep.subr.mxu0 0.0
    %94 = vmatpush1.msra.mxu0 0.0
    %95 = vmatprep.subr.mxu0 0.0
    %96 = vmatpush1.msra.mxu0 0.0
    %97 = vmatprep.subr.mxu0 0.0
    %98 = vmatpush1.msra.mxu0 0.0
    %99 = vmatprep.subr.mxu0 0.0
    %100 = vmatpush1.msra.mxu0 0.0
    %101 = vmatprep.subr.mxu0 0.0
    %102 = vmatpush1.msra.mxu0 0.0
    %103 = vmatprep.subr.mxu0 0.0
    %104 = vmatpush1.msra.mxu0 0.0
    %105 = vmatprep.subr.mxu0 0.0
    %106 = vmatpush1.msra.mxu0 0.0
    %107 = vmatprep.subr.mxu0 0.0
    %108 = vmatpush1.msra.mxu0 0.0
    %109 = vmatprep.subr.mxu0 0.0
    %110 = vmatpush1.msra.mxu0 0.0
    %111 = vmatprep.subr.mxu0 0.0
    %112 = vmatpush1.msra.mxu0 0.0
    %113 = vmatprep.subr.mxu0 0.0
    %114 = vmatpush1.msra.mxu0 0.0
    %115 = vmatprep.subr.mxu0 0.0
    %116 = vmatpush1.msra.mxu0 0.0
    %117 = vmatprep.subr.mxu0 0.0
    %118 = vmatpush1.msra.mxu0 0.0
    %119 = vmatprep.subr.mxu0 0.0
    %120 = vmatpush1.msra.mxu0 0.0
    %121 = vmatprep.subr.mxu0 0.0
    %122 = vmatpush1.msra.mxu0 0.0
    %123 = vmatprep.subr.mxu0 0.0
    %124 = vmatpush1.msra.mxu0 0.0
    %125 = vmatprep.subr.mxu0 0.0
    %126 = vmatpush1.msra.mxu0 0.0
    %127 = vmatprep.mubr.f32.mxu0 0.0
    %128 = vmatmul.mubr.f32.gmra.mrb[0].mxu0 %v54
    %v129 = vpop.f32.mrb[0].mxu0
    %v130 = vadd.f32 %v50, %v129
    %v131 = vpop.f32.mrb[0].mxu0
    %132 = vmatprep.mubr.f32.mxu0 0.0
    %133 = vmatmul.mubr.f32.gmra.mrb[0].mxu0 %v57
    %v134 = vpop.f32.mrb[0].mxu0
    %v135 = vadd.f32 %v50, %v134
    %v136 = vpop.f32.mrb[0].mxu0
    %137 = vdwg.mxu0
    %v138 = vld [vmem:[%s4] sm:$0xff]
    %v139 = vld [vmem:[%s4 + $0x8] sm:$0xff]
    %v140 = vld [vmem:[%s4 + $0x10] sm:$0xff]
    %v141 = vld [vmem:[%s4 + $0x18] sm:$0xff]
    %vm142 = vcmask 261120
    %v144 = vsel %vm142, %v130, 0
    %v147 = vsel %vm142, %v135, 0
    %149 = vmatprep.subr.mxu0 0.0
    %150 = vmatpush1.msra.mxu0 %v138
    %151 = vmatprep.subr.mxu0 0.0
    %152 = vmatpush1.msra.mxu0 %v139
    %153 = vmatprep.subr.mxu0 0.0
    %154 = vmatpush1.msra.mxu0 %v140
    %155 = vmatprep.subr.mxu0 0.0
    %156 = vmatpush1.msra.mxu0 %v141
    %157 = vmatprep.subr.mxu0 0.0
    %158 = vmatpush1.msra.mxu0 0.0
    %159 = vmatprep.subr.mxu0 0.0
    %160 = vmatpush1.msra.mxu0 0.0
    %161 = vmatprep.subr.mxu0 0.0
    %162 = vmatpush1.msra.mxu0 0.0
    %163 = vmatprep.subr.mxu0 0.0
    %164 = vmatpush1.msra.mxu0 0.0
    %165 = vmatprep.subr.mxu0 0.0
    %166 = vmatpush1.msra.mxu0 0.0
    %167 = vmatprep.subr.mxu0 0.0
    %168 = vmatpush1.msra.mxu0 0.0
    %169 = vmatprep.subr.mxu0 0.0
    %170 = vmatpush1.msra.mxu0 0.0
    %171 = vmatprep.subr.mxu0 0.0
    %172 = vmatpush1.msra.mxu0 0.0
    %173 = vmatprep.subr.mxu0 0.0
    %174 = vmatpush1.msra.mxu0 0.0
    %175 = vmatprep.subr.mxu0 0.0
    %176 = vmatpush1.msra.mxu0 0.0
    %177 = vmatprep.subr.mxu0 0.0
    %178 = vmatpush1.msra.mxu0 0.0
    %179 = vmatprep.subr.mxu0 0.0
    %180 = vmatpush1.msra.mxu0 0.0
    %181 = vmatprep.subr.mxu0 0.0
    %182 = vmatpush1.msra.mxu0 0.0
    %183 = vmatprep.subr.mxu0 0.0
    %184 = vmatpush1.msra.mxu0 0.0
    %185 = vmatprep.subr.mxu0 0.0
    %186 = vmatpush1.msra.mxu0 0.0
    %187 = vmatprep.subr.mxu0 0.0
    %188 = vmatpush1.msra.mxu0 0.0
    %189 = vmatprep.subr.mxu0 0.0
    %190 = vmatpush1.msra.mxu0 0.0
    %191 = vmatprep.subr.mxu0 0.0
    %192 = vmatpush1.msra.mxu0 0.0
    %193 = vmatprep.subr.mxu0 0.0
    %194 = vmatpush1.msra.mxu0 0.0
    %195 = vmatprep.subr.mxu0 0.0
    %196 = vmatpush1.msra.mxu0 0.0
    %197 = vmatprep.subr.mxu0 0.0
    %198 = vmatpush1.msra.mxu0 0.0
    %199 = vmatprep.subr.mxu0 0.0
    %200 = vmatpush1.msra.mxu0 0.0
    %201 = vmatprep.subr.mxu0 0.0
    %202 = vmatpush1.msra.mxu0 0.0
    %203 = vmatprep.subr.mxu0 0.0
    %204 = vmatpush1.msra.mxu0 0.0
    %205 = vmatprep.subr.mxu0 0.0
    %206 = vmatpush1.msra.mxu0 0.0
    %207 = vmatprep.subr.mxu0 0.0
    %208 = vmatpush1.msra.mxu0 0.0
    %209 = vmatprep.subr.mxu0 0.0
    %210 = vmatpush1.msra.mxu0 0.0
    %211 = vmatprep.subr.mxu0 0.0
    %212 = vmatpush1.msra.mxu0 0.0
    %213 = vmatprep.mubr.f32.mxu0 0.0
    %214 = vmatmul.mubr.f32.gmra.mrb[0].mxu0 %v144
    %v215 = vpop.f32.mrb[0].mxu0
    %v216 = vadd.f32 0.0, %v215
    %v217 = vpop.f32.mrb[0].mxu0
    %218 = vmatprep.mubr.f32.mxu0 0.0
    %219 = vmatmul.mubr.f32.gmra.mrb[0].mxu0 %v147
    %v220 = vpop.f32.mrb[0].mxu0
    %v221 = vadd.f32 0.0, %v220
    %v222 = vpop.f32.mrb[0].mxu0
    %223 = vdwg.mxu0
    %v224 = vsel %vm142, %v216, 0.0
    %v225 = vrot.slane %v224, 4
    %v226 = vadd.f32 %v224, %v225
    %v227 = vrot.slane %v226, 2
    %v228 = vadd.f32 %v226, %v227
    %v229 = vrot.slane %v228, 1
    %v230 = vadd.f32 %v228, %v229
    %v231 = vsel %vm142, %v221, 0.0
    %v232 = vrot.slane %v231, 4
    %v233 = vadd.f32 %v231, %v232
    %v234 = vrot.slane %v233, 2
    %v235 = vadd.f32 %v233, %v234
    %v236 = vrot.slane %v235, 1
    %v237 = vadd.f32 %v235, %v236
    %v238 = vrcp.pop 8.0
    %v239 = vmul.f32 %v230, %v238
    %v240 = vmul.f32 %v237, %v238
    %v241 = vld [vmem:[%s5] sm:$0x1]
    %v242 = vadd.f32 %v239, %v241
    %v243 = vadd.f32 %v240, %v241
    %v244 = vld [vmem:[%s6] sm:$0x1]
    %v246 = vlaneseq
    %v247 = vshrl.u32 %v246, 7
    %v248 = vsub.s32 0, %v247
    %v249 = vrot.slane %v244, %v248
    %250 = vrot.lane.b32.xlu0 %v249, 32
    %v251 = vpop.permute.xlu0 %250
    %v253 = vadd.f32 %v216, %v251
    %v254 = vadd.f32 %v221, %v251
    %v255 = vlaneseq
    %v256 = vshrl.u32 %v255, 7
    %v257 = vsub.s32 0, %v256
    %v258 = vrot.slane %v242, %v257
    %v259 = vlaneseq
    %v260 = vshrl.u32 %v259, 7
    %v261 = vsub.s32 0, %v260
    %v262 = vrot.slane %v243, %v261
    %265 = vrot.lane.b32.xlu0 %v253, 96
    %v266 = vpop.permute.xlu0 %265
    %267 = vrot.lane.b32.xlu0 %v254, 96
    %v268 = vpop.permute.xlu0 %267
    %v271 = vmul.f32 %v258, %v266
    %v272 = vmul.f32 %v262, %v268
    %v273 = vsel %vm142, %v271, 0.0
    %274 = vadd.xlane.f32.xlu0 %v273
    %v275 = vpop.xlane.xlu0 %274
    %v276 = vsel %vm142, %v272, 0.0
    %277 = vadd.xlane.f32.xlu0 %v276
    %v278 = vpop.xlane.xlu0 %277
    %v279 = vtanh.pop %v275
    %v280 = vtanh.pop %v278
    %v281 = vmul.f32 %v279, 10.0
    %v282 = vmul.f32 %v280, 10.0
    %v283 = vld [vmem:[%s1] sm:$0x3]
    %vm284 = vcmp.gt.f32.partialorder %v283, 0.5
    %v287 = vlaneseq
    %v288 = vand.u32 %v287, 127
    %v289 = vlaneseq
    %v290 = vshrl.u32 %v289, 7
    %v291 = vsub.s32 %v288, %v290
    %v292 = vrot.slane %v281, %v291
    %v293 = vlaneseq
    %v294 = vshrl.u32 %v293, 7
    %v295 = vsub.s32 %v288, %v294
    %v296 = vrot.slane %v282, %v295
    %vm297 = vcmask 1041409
    %v298 = vsel %vm297, %v296, %v292
    %v300 = vsel %vm284, -1e+30, %v298
    %vm301 = vcmask 58368
    %v302 = vsel %vm301, %v300, -inf
    %303 = vmax.xlane.f32.xlu0 %v302
    %v304 = vpop.xlane.xlu0 %303
    %v305 = vsub.f32 %v300, %v304
    %v306 = vmul.f32 %v305, 1.442695
    %v307 = vpow.pop %v306
    %v308 = vsel %vm301, %v307, 0.0
    %309 = vadd.xlane.f32.xlu0 %v308
    %v310 = vpop.xlane.xlu0 %309
    %v311 = vrcp.pop %v310
    %v312 = vmul.f32 %v307, %v311
    %313 = vst.msk [vmem:[#allocation5] sm:$0x3] %vm301, %v312
    %v314 = vsel %vm301, %v312, -inf
    %315 = vmax.xlane.f32.xlu0 %v314
    %v316 = vpop.xlane.xlu0 %315
    %vm317 = vcmp.ge.f32.partialorder %v312, %v316
    %v318 = vsel %vm317, %v288, 8
    %v319 = vsel %vm301, %v318, 2147483647
    %v320 = vand.u32 %v319, 65535
    %v321 = vshra.s32 %v319, 16
    %v322 = vcvt.s32.f32 %v320
    %v323 = vcvt.s32.f32 %v321
    %324 = vmin.xlane.f32.xlu0 %v323
    %v325 = vpop.xlane.xlu0 %324
    %vm326 = vcmp.eq.f32.partialorder %v323, %v325
    %v327 = vsel %vm326, %v322, inf
    %328 = vmin.xlane.f32.xlu0 %v327
    %v329 = vpop.xlane.xlu0 %328
    %v330 = vcvt.f32.s32 %v329
    %v331 = vcvt.f32.s32 %v325
    %v332 = vshll.u32 %v331, 16
    %v333 = vadd.s32 %v332, %v330
    %vm334 = vcmask 1024
    %335 = vst.msk [vmem:[%s8] sm:$0x3] %vm334, %v333
    %336 = vst.msk [vmem:[%s9] sm:$0x3] %vm334, %v316
    // Predicated region
    $region34: #{tpu_custom_call.1} parent=1 // pred_check
      _
    $region35: #{tpu_custom_call.1} parent=1 // pred_check_branch
      %338 = sbr.rel (0) target = $region37
    $region36: #{tpu_custom_call.1} parent=1 // pred_region
      %s340 = ssub.s32 32, 32
      %341 = vsyncadd [#allocation4], %s340
      %s343 = sshll.u32 [#allocation5], 4
      %s344 = int_to_ptr.vmem [resolvable:$true] %s343
      %346 = dma.vmem_to_hbm [thread:$0]  %s344, 32, %s7, [#allocation4]
    $region37: #{tpu_custom_call.1} parent=1 // pred_fallthru
      _
    // Predicated region
    $region38: #{tpu_custom_call.1} parent=1 // pred_check
      _
    $region39: #{tpu_custom_call.1} parent=1 // pred_check_branch
      %348 = sbr.rel (0) target = $region41
    $region40: #{tpu_custom_call.1} parent=1 // pred_region
      _
    $region41: #{tpu_custom_call.1} parent=1 // pred_fallthru
      _
    // Predicated region
    $region42: #{tpu_custom_call.1} parent=1 // pred_check
      _
    $region43: #{tpu_custom_call.1} parent=1 // pred_check_branch
      %350 = sbr.rel (0) target = $region45
    $region44: #{tpu_custom_call.1} parent=1 // pred_region
      _
    $region45: #{tpu_custom_call.1} parent=1 // pred_fallthru
      _
    // Predicated region
    $region46: #{tpu_custom_call.1} parent=1 // pred_check
      _
    $region47: #{tpu_custom_call.1} parent=1 // pred_check_branch
      %352 = sbr.rel (0) target = $region49
    $region48: #{tpu_custom_call.1} parent=1 // pred_region
      %353 = dma.done [#allocation4], 32
    $region49: #{tpu_custom_call.1} parent=1 // pred_fallthru
      _
    // Predicated region
    $region50: #{tpu_custom_call.1} parent=1 // pred_check
      _
    $region51: #{tpu_custom_call.1} parent=1 // pred_check_branch
      %355 = sbr.rel (0) target = $region53
    $region52: #{tpu_custom_call.1} parent=1 // pred_region
      _
    $region53: #{tpu_custom_call.1} parent=1 // pred_fallthru
      _
    // Predicated region
    $region54: #{tpu_custom_call.1} parent=1 // pred_check
      _
    $region55: #{tpu_custom_call.1} parent=1 // pred_check_branch
      %357 = sbr.rel (0) target = $region57
    $region56: #{tpu_custom_call.1} parent=1 // pred_region
      _
    $region57: #{tpu_custom_call.1} parent=1 // pred_fallthru
      _
    %358 = vsyncpa [#allocation3], 1
    %359 = vsyncpa [#allocation4], 1

</llo_original>
